<compile_context>
chip_gen: v5e
topology: v5e:2x2
jax: 0.10.0
libtpu: 0.0.40
codegen_flags: <defaults>
</compile_context>

<pallas_src>
import functools

import jax
import jax.numpy as jnp
from jax.experimental import pallas as pl
from jax.experimental.pallas import tpu as pltpu


def _round_up(x, m):
    return ((x + m - 1) // m) * m


def _two_mlp_head_kernel(x_ref, w6_ref, b6_ref, w7_ref, b7_ref, o_ref, acc_ref):
    k = pl.program_id(1)

    @pl.when(k == 0)
    def _():
        acc_ref[...] = jnp.zeros_like(acc_ref)

    # fc6 partial product for this K tile (f32 accumulation on the MXU).
    acc_ref[...] += jnp.dot(x_ref[...], w6_ref[...],
                            preferred_element_type=jnp.float32)

    # Epilogue on the last K step: b6 + ReLU, fc7, b7 + ReLU, store.
    @pl.when(k == pl.num_programs(1) - 1)
    def _():
        h = jnp.maximum(acc_ref[...] + b6_ref[...], 0.0)
        o = jnp.dot(h, w7_ref[...], preferred_element_type=jnp.float32)
        o = jnp.maximum(o + b7_ref[...], 0.0)
        o_ref[...] = o.astype(o_ref.dtype)


@functools.partial(jax.jit, static_argnames=("tm", "tk"))
def two_mlp_head(x_nchw, w6, b6, w7, b7, *, tm=256, tk=512):
    """x_nchw: (N, C, H, W).  Returns (N, representation_size) float32.

    Equivalent to: relu(relu(flatten(x) @ w6 + b6) @ w7 + b7).
    """
    n = x_nchw.shape[0]
    x2d = x_nchw.reshape(n, -1).astype(jnp.float32)   # flatten(start_dim=1)
    d_in = x2d.shape[1]
    r = w6.shape[1]

    # ---- pad to TPU-friendly sizes --------------------------------------
    tm = min(tm, _round_up(n, 8))          # row tile: multiple of 8 sublanes
    tk = min(tk, _round_up(d_in, 128))     # reduction tile: multiple of 128
    n_pad = _round_up(n, tm)
    d_pad = _round_up(d_in, tk)
    r_pad = max(128, _round_up(r, 128))    # lane-dense / MXU-aligned output

    x_p = jnp.pad(x2d, ((0, n_pad - n), (0, d_pad - d_in)))
    w6_p = jnp.pad(w6.astype(jnp.float32), ((0, d_pad - d_in), (0, r_pad - r)))
    w7_p = jnp.pad(w7.astype(jnp.float32), ((0, r_pad - r), (0, r_pad - r)))
    b6_p = jnp.pad(b6.astype(jnp.float32).reshape(1, r), ((0, 0), (0, r_pad - r)))
    b7_p = jnp.pad(b7.astype(jnp.float32).reshape(1, r), ((0, 0), (0, r_pad - r)))

    grid = (n_pad // tm, d_pad // tk)

    # VMEM budget: double-buffered streaming tiles (x, w6, out) + resident
    # w7/b6/b7 + accumulator scratch, with headroom.  Capped well under the
    # v7x 64 MiB physical VMEM.
    est = 4 * (2 * (tm * tk + tk * r_pad)      # x, w6 tiles (double-buffered)
               + 2 * tm * r_pad                # out tile (double-buffered)
               + tm * r_pad                    # accumulator scratch
               + r_pad * r_pad + 2 * r_pad)    # resident w7, b6, b7
    vmem_limit = min(int(est * 1.5) + (4 << 20), 48 << 20)

    out_p = pl.pallas_call(
        _two_mlp_head_kernel,
        out_shape=jax.ShapeDtypeStruct((n_pad, r_pad), jnp.float32),
        grid_spec=pltpu.PrefetchScalarGridSpec(
            num_scalar_prefetch=0,
            grid=grid,
            in_specs=[
                pl.BlockSpec((tm, tk), lambda i, k: (i, k)),        # x tile
                pl.BlockSpec((tk, r_pad), lambda i, k: (k, 0)),     # w6 tile
                pl.BlockSpec((1, r_pad), lambda i, k: (0, 0)),      # b6 (resident)
                pl.BlockSpec((r_pad, r_pad), lambda i, k: (0, 0)),  # w7 (resident)
                pl.BlockSpec((1, r_pad), lambda i, k: (0, 0)),      # b7 (resident)
            ],
            out_specs=pl.BlockSpec((tm, r_pad), lambda i, k: (i, 0)),
            scratch_shapes=[pltpu.VMEM((tm, r_pad), jnp.float32)],
        ),
        compiler_params=pltpu.CompilerParams(
            dimension_semantics=("parallel", "arbitrary"),
            vmem_limit_bytes=vmem_limit,
        ),
    )(x_p, w6_p, b6_p, w7_p, b7_p)

    return out_p[:n, :r]


def _ref_forward(x_nchw, w6, b6, w7, b7):
    x = x_nchw.reshape(x_nchw.shape[0], -1)
    h = jnp.maximum(x @ w6 + b6, 0.0)
    return jnp.maximum(h @ w7 + b7, 0.0)


def _make_params(key, in_channels, representation_size):
    k6w, k6b, k7w, k7b = jax.random.split(key, 4)
    bound6 = 1.0 / (in_channels ** 0.5)
    w6 = jax.random.uniform(k6w, (in_channels, representation_size),
                            minval=-bound6, maxval=bound6, dtype=jnp.float32)
    b6 = jax.random.uniform(k6b, (representation_size,),
                            minval=-bound6, maxval=bound6, dtype=jnp.float32)
    bound7 = 1.0 / (representation_size ** 0.5)
    w7 = jax.random.uniform(k7w, (representation_size, representation_size),
                            minval=-bound7, maxval=bound7, dtype=jnp.float32)
    b7 = jax.random.uniform(k7b, (representation_size,),
                            minval=-bound7, maxval=bound7, dtype=jnp.float32)
    return w6, b6, w7, b7


if __name__ == "__main__":
    key = jax.random.PRNGKey(0)
    k1, k2, kp1, kp2 = jax.random.split(key, 4)

    # --- test 1: module-consistent small shape (N=2, C=4, H=W=16, R=32) ---
    N, C, H, W = 2, 4, 16, 16
    in_channels = C * H * W                   # 1024 -> 2 K-tiles at tk=512
    representation_size = 32                  # padded to 128 lanes internally

    x = jax.random.normal(k1, (N, C, H, W), dtype=jnp.float32)
    w6, b6, w7, b7 = _make_params(kp1, in_channels, representation_size)

    out = jax.block_until_ready(two_mlp_head(x, w6, b6, w7, b7))
    ref = _ref_forward(x, w6, b6, w7, b7)
    assert out.shape == (N, representation_size)
    assert jnp.allclose(out, ref, atol=1e-4, rtol=1e-4)

    # --- test 2: exercise multiple M and K tiles + R padding -------------
    N2, C2, H2, W2 = 24, 6, 8, 8              # d_in = 384
    r2 = 96
    x2 = jax.random.normal(k2, (N2, C2, H2, W2), dtype=jnp.float32)
    w6b, b6b, w7b, b7b = _make_params(kp2, C2 * H2 * W2, r2)

    out2 = jax.block_until_ready(
        two_mlp_head(x2, w6b, b6b, w7b, b7b, tm=8, tk=128))  # 3 M-tiles, 3 K-tiles
    ref2 = _ref_forward(x2, w6b, b6b, w7b, b7b)
    assert out2.shape == (N2, r2)
    assert jnp.allclose(out2, ref2, atol=1e-4, rtol=1e-4)

    print("KERNEL_OK")
</pallas_src>

<mosaic_0001>
module attributes {stable_mosaic.version = 11 : i64} {
  func.func @_two_mlp_head_kernel(%arg0: i32, %arg1: i32, %arg2: memref<8x512xf32, #tpu.memory_space<vmem>>, %arg3: memref<512x128xf32, #tpu.memory_space<vmem>>, %arg4: memref<1x128xf32, #tpu.memory_space<vmem>>, %arg5: memref<128x128xf32, #tpu.memory_space<vmem>>, %arg6: memref<1x128xf32, #tpu.memory_space<vmem>>, %arg7: memref<8x128xf32, #tpu.memory_space<vmem>>, %arg8: memref<8x128xf32, #tpu.memory_space<vmem>>) attributes {dimension_semantics = [#tpu.dimension_semantics<parallel>, #tpu.dimension_semantics<arbitrary>], iteration_bounds = array<i64: 1, 2>, scalar_prefetch = 0 : i64, scratch_operands = 1 : i64, tpu.core_type = #tpu.core_type<tc>, window_params = [{transform_indices = @transform_0, window_bounds = array<i64: 8, 512>}, {transform_indices = @transform_1, window_bounds = array<i64: 512, 128>}, {pipeline_mode = #tpu.pipeline_mode<synchronous>, transform_indices = @transform_2, window_bounds = array<i64: 1, 128>}, {pipeline_mode = #tpu.pipeline_mode<synchronous>, transform_indices = @transform_3, window_bounds = array<i64: 128, 128>}, {pipeline_mode = #tpu.pipeline_mode<synchronous>, transform_indices = @transform_4, window_bounds = array<i64: 1, 128>}, {transform_indices = @transform_5, window_bounds = array<i64: 8, 128>}]} {
    %c0_i32 = arith.constant 0 : i32
    %0 = arith.cmpi eq, %arg1, %c0_i32 : i32
    %1 = arith.extui %0 : i1 to i32
    %c0_i32_0 = arith.constant 0 : i32
    %2 = arith.cmpi ne, %1, %c0_i32_0 : i32
    scf.if %2 {
      %cst_9 = arith.constant 0.000000e+00 : f32
      %12 = vector.broadcast %cst_9 : f32 to vector<8x128xf32>
      %c0_10 = arith.constant 0 : index
      %c0_11 = arith.constant 0 : index
      %13 = vector.load %arg8[%c0_10, %c0_11] : memref<8x128xf32, #tpu.memory_space<vmem>>, vector<8x128xf32>
      tpu.vector_store %arg8[%c0_10, %c0_11], %12 {strides = array<i32>} : memref<8x128xf32, #tpu.memory_space<vmem>>, vector<8x128xf32>,
    } else {
    }
    %c0 = arith.constant 0 : index
    %c0_1 = arith.constant 0 : index
    %3 = vector.load %arg8[%c0, %c0_1] : memref<8x128xf32, #tpu.memory_space<vmem>>, vector<8x128xf32>
    %c0_2 = arith.constant 0 : index
    %c0_3 = arith.constant 0 : index
    %4 = vector.load %arg2[%c0_2, %c0_3] : memref<8x512xf32, #tpu.memory_space<vmem>>, vector<8x512xf32>
    %c0_4 = arith.constant 0 : index
    %c0_5 = arith.constant 0 : index
    %5 = vector.load %arg3[%c0_4, %c0_5] : memref<512x128xf32, #tpu.memory_space<vmem>>, vector<512x128xf32>
    %cst = arith.constant dense<0.000000e+00> : vector<8x128xf32>
    %6 = tpu.matmul %4, %5, %cst {dimension_numbers = #tpu.dot_dimension_numbers<[1], [0], [0], [1], [0, 0, 1, 1], [], []>} : vector<8x512xf32>, vector<512x128xf32>, vector<8x128xf32> -> vector<8x128xf32>
    %7 = arith.addf %3, %6 : vector<8x128xf32>
    %c0_6 = arith.constant 0 : index
    %c0_7 = arith.constant 0 : index
    %8 = vector.load %arg8[%c0_6, %c0_7] : memref<8x128xf32, #tpu.memory_space<vmem>>, vector<8x128xf32>
    tpu.vector_store %arg8[%c0_6, %c0_7], %7 {strides = array<i32>} : memref<8x128xf32, #tpu.memory_space<vmem>>, vector<8x128xf32>,
    %c1_i32 = arith.constant 1 : i32
    %9 = arith.cmpi eq, %arg1, %c1_i32 : i32
    %10 = arith.extui %9 : i1 to i32
    %c0_i32_8 = arith.constant 0 : i32
    %11 = arith.cmpi ne, %10, %c0_i32_8 : i32
    scf.if %11 {
      %c0_9 = arith.constant 0 : index
      %c0_10 = arith.constant 0 : index
      %12 = vector.load %arg8[%c0_9, %c0_10] : memref<8x128xf32, #tpu.memory_space<vmem>>, vector<8x128xf32>
      %c0_11 = arith.constant 0 : index
      %c0_12 = arith.constant 0 : index
      %13 = vector.load %arg4[%c0_11, %c0_12] : memref<1x128xf32, #tpu.memory_space<vmem>>, vector<1x128xf32>
      %14 = vector.broadcast %13 : vector<1x128xf32> to vector<8x128xf32>
      %15 = arith.addf %12, %14 : vector<8x128xf32>
      %cst_13 = arith.constant 0.000000e+00 : f32
      %16 = vector.broadcast %cst_13 : f32 to vector<8x128xf32>
      %17 = arith.maximumf %15, %16 : vector<8x128xf32>
      %c0_14 = arith.constant 0 : index
      %c0_15 = arith.constant 0 : index
      %18 = vector.load %arg5[%c0_14, %c0_15] : memref<128x128xf32, #tpu.memory_space<vmem>>, vector<128x128xf32>
      %cst_16 = arith.constant dense<0.000000e+00> : vector<8x128xf32>
      %19 = tpu.matmul %17, %18, %cst_16 {dimension_numbers = #tpu.dot_dimension_numbers<[1], [0], [0], [1], [0, 0, 1, 1], [], []>} : vector<8x128xf32>, vector<128x128xf32>, vector<8x128xf32> -> vector<8x128xf32>
      %c0_17 = arith.constant 0 : index
      %c0_18 = arith.constant 0 : index
      %20 = vector.load %arg6[%c0_17, %c0_18] : memref<1x128xf32, #tpu.memory_space<vmem>>, vector<1x128xf32>
      %21 = vector.broadcast %20 : vector<1x128xf32> to vector<8x128xf32>
      %22 = arith.addf %19, %21 : vector<8x128xf32>
      %cst_19 = arith.constant 0.000000e+00 : f32
      %23 = vector.broadcast %cst_19 : f32 to vector<8x128xf32>
      %24 = arith.maximumf %22, %23 : vector<8x128xf32>
      %c0_20 = arith.constant 0 : index
      %c0_21 = arith.constant 0 : index
      %25 = vector.load %arg7[%c0_20, %c0_21] : memref<8x128xf32, #tpu.memory_space<vmem>>, vector<8x128xf32>
      tpu.vector_store %arg7[%c0_20, %c0_21], %24 {strides = array<i32>} : memref<8x128xf32, #tpu.memory_space<vmem>>, vector<8x128xf32>,
    } else {
    }
    return
  }
  func.func @transform_0(%arg0: i32, %arg1: i32) -> (i32, i32) {
    %c0_i32 = arith.constant 0 : i32
    return %arg0, %arg1 : i32, i32
  }
  func.func @transform_1(%arg0: i32, %arg1: i32) -> (i32, i32) {
    %c0_i32 = arith.constant 0 : i32
    %c0_i32_0 = arith.constant 0 : i32
    return %arg1, %c0_i32 : i32, i32
  }
  func.func @transform_2(%arg0: i32, %arg1: i32) -> (i32, i32) {
    %c0_i32 = arith.constant 0 : i32
    %c0_i32_0 = arith.constant 0 : i32
    %c0_i32_1 = arith.constant 0 : i32
    return %c0_i32, %c0_i32_0 : i32, i32
  }
  func.func @transform_3(%arg0: i32, %arg1: i32) -> (i32, i32) {
    %c0_i32 = arith.constant 0 : i32
    %c0_i32_0 = arith.constant 0 : i32
    %c0_i32_1 = arith.constant 0 : i32
    return %c0_i32, %c0_i32_0 : i32, i32
  }
  func.func @transform_4(%arg0: i32, %arg1: i32) -> (i32, i32) {
    %c0_i32 = arith.constant 0 : i32
    %c0_i32_0 = arith.constant 0 : i32
    %c0_i32_1 = arith.constant 0 : i32
    return %c0_i32, %c0_i32_0 : i32, i32
  }
  func.func @transform_5(%arg0: i32, %arg1: i32) -> (i32, i32) {
    %c0_i32 = arith.constant 0 : i32
    %c0_i32_0 = arith.constant 0 : i32
    return %arg0, %c0_i32 : i32, i32
  }
}

</mosaic_0001>

<llo_original>
// kernel: two_mlp_head.1
$region0: #{two_mlp_head.1}
  #allocation0 [shape = 'u32[]', space=smem, size = 0x4, offset = 0x4, fixed_abs, tag = 'smem constant byte address 0x4 - core index']
  #allocation1 [shape = 'u32[72,128]{1,0:T(1,128)}', space=vmem, size = 0x9000, scoped, tag = 'internal scratch']
  #allocation2 [shape = 'f32[8,128]{1,0:T(8,128)}', space=vmem, size = 0x1000, scoped, tag = 'scratch operand']
  %s0 = inlined_call_operand.vmem [shape: f32[8,1024], index: 0, kind: input, shape index: {}]
  %s1 = inlined_call_operand.vmem [shape: f32[1024,128], index: 1, kind: input, shape index: {}]
  %s2 = inlined_call_operand.vmem [shape: f32[1,128], index: 2, kind: input, shape index: {}]
  %s3 = inlined_call_operand.vmem [shape: f32[128,128], index: 3, kind: input, shape index: {}]
  %s4 = inlined_call_operand.vmem [shape: f32[1,128], index: 4, kind: input, shape index: {}]
  %s5 = inlined_call_operand.vmem [shape: f32[8,128], index: 5, kind: output, shape index: {}]
  %s6 = sld [smem:[#allocation0]]
  $region61: #{two_mlp_head.1} parent=0
    _
  %s8 = ssub.s32 1, %s6
  %s9 = scalar_select 0, %s8, %s6
  loop: start=0, step=1, limit=4
  $region2: #{two_mlp_head.1} parent=0 // loop_pre_header
    _
  $region3: #{two_mlp_head.1} parent=0 // loop_header
    %s11 = sphi 0, %s15
    %p12 = scmp.ge.s32.totalorder %s11, 4
    %s18 = sphi 0, %s30
    %s19 = sphi 0, %s26
    %s20 = sphi 0, %s18
    %s21 = sphi 0, %s19
    %s22 = sphi 0, %s20
    %s23 = sphi 0, %s21
    %s35 = sphi 0, %s37
    %s38 = sphi 0, %s35
    %s39 = sphi 0, %s38
    %s55 = sphi 0, %s39
    %s61 = sphi 0, %s63
    %s64 = sphi 0, %s61
    %s65 = sphi 0, %s64
    %s81 = sphi 0, %s65
    %s85 = sphi 0, %s85
    %s87 = sphi 0, %s85
    %s88 = sphi 0, %s87
    %s102 = sphi 0, %s88
    %s106 = sphi 0, %s106
    %s108 = sphi 0, %s106
    %s109 = sphi 0, %s108
    %s123 = sphi 0, %s109
    %s127 = sphi 0, %s127
    %s129 = sphi 0, %s127
    %s130 = sphi 0, %s129
    %s144 = sphi 0, %s130
    %s150 = sphi 0, %s152
    %s153 = sphi 0, %s150
    %s154 = sphi 0, %s153
    %s170 = sphi 0, %s154
  $region4: #{two_mlp_head.1} parent=0 // loop_header_branch
    %14 = sbr.rel (%p12) target = $region8
  $region5: #{two_mlp_head.1} parent=0 // loop_body
    %s16 = ssub.s32 %s11, 1
    %s17 = ssub.s32 %s11, 2
    %s24 = sadd.s32 1, %s19
    %p25 = scmp.ge.s32.totalorder %s24, 2
    %s26 = scalar_select %p25, 0, %s24
    %s27 = sadd.s32 1, %s18
    %s28 = scalar_select %p25, %s27, %s18
    %p29 = scmp.ge.s32.totalorder %s28, 1
    %s30 = scalar_select %p29, 0, %s28
    %s31 = ssub.s32 %s18, %s30
    %s32 = ssub.s32 %s19, %s26
    %s33 = sor.u32 %s31, %s32
    %p34 = scmp.eq.s32.totalorder %s33, 0
    %s36 = sadd.s32 %s35, 1
    %s37 = scalar_select %p34, %s35, %s36
    %p40 = pneg %p34
    %p41 = scmp.eq.s32.totalorder %s11, 1
    %p42 = por %p40, %p41
    %p43 = scmp.ne.s32.totalorder %s35, %s38
    %p44 = scmp.eq.s32.totalorder %s11, 0
    %p45 = por %p43, %p44
    %p46 = scmp.ne.s32.totalorder %s35, %s38
    %p47 = scmp.eq.s32.totalorder %s16, 1
    %p48 = por %p46, %p47
    %p49 = scmp.ne.s32.totalorder %s38, %s39
    %p50 = scmp.eq.s32.totalorder %s16, 0
    %p51 = por %p49, %p50
    %p52 = scmp.ne.s32.totalorder %s38, %s39
    %p53 = scmp.eq.s32.totalorder %s17, 1
    %p54 = por %p52, %p53
    %p56 = scmp.ne.s32.totalorder %s39, %s55
    %p57 = scmp.eq.s32.totalorder %s17, 0
    %p58 = por %p56, %p57
    %s59 = ssub.s32 %s19, %s26
    %p60 = scmp.eq.s32.totalorder %s59, 0
    %s62 = sadd.s32 %s61, 1
    %s63 = scalar_select %p60, %s61, %s62
    %p66 = pneg %p60
    %p67 = scmp.eq.s32.totalorder %s11, 1
    %p68 = por %p66, %p67
    %p69 = scmp.ne.s32.totalorder %s61, %s64
    %p70 = scmp.eq.s32.totalorder %s11, 0
    %p71 = por %p69, %p70
    %p72 = scmp.ne.s32.totalorder %s61, %s64
    %p73 = scmp.eq.s32.totalorder %s16, 1
    %p74 = por %p72, %p73
    %p75 = scmp.ne.s32.totalorder %s64, %s65
    %p76 = scmp.eq.s32.totalorder %s16, 0
    %p77 = por %p75, %p76
    %p78 = scmp.ne.s32.totalorder %s64, %s65
    %p79 = scmp.eq.s32.totalorder %s17, 1
    %p80 = por %p78, %p79
    %p82 = scmp.ne.s32.totalorder %s65, %s81
    %p83 = scmp.eq.s32.totalorder %s17, 0
    %p84 = por %p82, %p83
    %s86 = sadd.s32 %s85, 1
    %p89 = scmp.eq.s32.totalorder %s11, 1
    %p90 = scmp.ne.s32.totalorder %s85, %s87
    %p91 = scmp.eq.s32.totalorder %s11, 0
    %p92 = por %p90, %p91
    %p93 = scmp.ne.s32.totalorder %s85, %s87
    %p94 = scmp.eq.s32.totalorder %s16, 1
    %p95 = por %p93, %p94
    %p96 = scmp.ne.s32.totalorder %s87, %s88
    %p97 = scmp.eq.s32.totalorder %s16, 0
    %p98 = por %p96, %p97
    %p99 = scmp.ne.s32.totalorder %s87, %s88
    %p100 = scmp.eq.s32.totalorder %s17, 1
    %p101 = por %p99, %p100
    %p103 = scmp.ne.s32.totalorder %s88, %s102
    %p104 = scmp.eq.s32.totalorder %s17, 0
    %p105 = por %p103, %p104
    %s107 = sadd.s32 %s106, 1
    %p110 = scmp.eq.s32.totalorder %s11, 1
    %p111 = scmp.ne.s32.totalorder %s106, %s108
    %p112 = scmp.eq.s32.totalorder %s11, 0
    %p113 = por %p111, %p112
    %p114 = scmp.ne.s32.totalorder %s106, %s108
    %p115 = scmp.eq.s32.totalorder %s16, 1
    %p116 = por %p114, %p115
    %p117 = scmp.ne.s32.totalorder %s108, %s109
    %p118 = scmp.eq.s32.totalorder %s16, 0
    %p119 = por %p117, %p118
    %p120 = scmp.ne.s32.totalorder %s108, %s109
    %p121 = scmp.eq.s32.totalorder %s17, 1
    %p122 = por %p120, %p121
    %p124 = scmp.ne.s32.totalorder %s109, %s123
    %p125 = scmp.eq.s32.totalorder %s17, 0
    %p126 = por %p124, %p125
    %s128 = sadd.s32 %s127, 1
    %p131 = scmp.eq.s32.totalorder %s11, 1
    %p132 = scmp.ne.s32.totalorder %s127, %s129
    %p133 = scmp.eq.s32.totalorder %s11, 0
    %p134 = por %p132, %p133
    %p135 = scmp.ne.s32.totalorder %s127, %s129
    %p136 = scmp.eq.s32.totalorder %s16, 1
    %p137 = por %p135, %p136
    %p138 = scmp.ne.s32.totalorder %s129, %s130
    %p139 = scmp.eq.s32.totalorder %s16, 0
    %p140 = por %p138, %p139
    %p141 = scmp.ne.s32.totalorder %s129, %s130
    %p142 = scmp.eq.s32.totalorder %s17, 1
    %p143 = por %p141, %p142
    %p145 = scmp.ne.s32.totalorder %s130, %s144
    %p146 = scmp.eq.s32.totalorder %s17, 0
    %p147 = por %p145, %p146
    %s148 = ssub.s32 %s18, %s30
    %p149 = scmp.eq.s32.totalorder %s148, 0
    %s151 = sadd.s32 %s150, 1
    %s152 = scalar_select %p149, %s150, %s151
    %p155 = pneg %p149
    %p156 = scmp.eq.s32.totalorder %s11, 1
    %p157 = por %p155, %p156
    %p158 = scmp.ne.s32.totalorder %s150, %s153
    %p159 = scmp.eq.s32.totalorder %s11, 0
    %p160 = por %p158, %p159
    %p161 = scmp.ne.s32.totalorder %s150, %s153
    %p162 = scmp.eq.s32.totalorder %s16, 1
    %p163 = por %p161, %p162
    %p164 = scmp.ne.s32.totalorder %s153, %s154
    %p165 = scmp.eq.s32.totalorder %s16, 0
    %p166 = por %p164, %p165
    %p167 = scmp.ne.s32.totalorder %s153, %s154
    %p168 = scmp.eq.s32.totalorder %s17, 1
    %p169 = por %p167, %p168
    %p171 = scmp.ne.s32.totalorder %s154, %s170
    %p172 = scmp.eq.s32.totalorder %s17, 0
    %p173 = por %p171, %p172
    %p174 = scmp.le.s32.totalorder 1, %s11
    %p175 = scmp.lt.s32.totalorder %s11, 3
    %p176 = pnand %p174, %p175
    %p177 = pneg %p176
    // Predicated region
    $region9: #{two_mlp_head.1} parent=5 // pred_check
      _
    $region10: #{two_mlp_head.1} parent=5 // pred_check_branch
      %179 = sbr.rel (%p176) target = $region12
    $region11: #{two_mlp_head.1} parent=5 // pred_region
      %s180 = ssub.s32 %s11, 1
      // Predicated region
      $region13: #{two_mlp_head.1} parent=11 // pred_check
        %p181 = pneg %p98
      $region14: #{two_mlp_head.1} parent=11 // pred_check_branch
        %183 = sbr.rel (%p181) target = $region16
      $region15: #{two_mlp_head.1} parent=11 // pred_region
        _
      $region16: #{two_mlp_head.1} parent=11 // pred_fallthru
        _
      // Predicated region
      $region17: #{two_mlp_head.1} parent=11 // pred_check
        %p184 = pneg %p119
      $region18: #{two_mlp_head.1} parent=11 // pred_check_branch
        %186 = sbr.rel (%p184) target = $region20
      $region19: #{two_mlp_head.1} parent=11 // pred_region
        _
      $region20: #{two_mlp_head.1} parent=11 // pred_fallthru
        _
      // Predicated region
      $region21: #{two_mlp_head.1} parent=11 // pred_check
        %p187 = pneg %p140
      $region22: #{two_mlp_head.1} parent=11 // pred_check_branch
        %189 = sbr.rel (%p187) target = $region24
      $region23: #{two_mlp_head.1} parent=11 // pred_region
        _
      $region24: #{two_mlp_head.1} parent=11 // pred_fallthru
        _
    $region12: #{two_mlp_head.1} parent=5 // pred_fallthru
      _
    %p190 = scmp.lt.s32.totalorder %s11, 2
    // Predicated region
    $region25: #{two_mlp_head.1} parent=5 // pred_check
      %p191 = pneg %p190
    $region26: #{two_mlp_head.1} parent=5 // pred_check_branch
      %193 = sbr.rel (%p191) target = $region28
    $region27: #{two_mlp_head.1} parent=5 // pred_region
      // Predicated region
      $region29: #{two_mlp_head.1} parent=27 // pred_check
        %p194 = pneg %p45
      $region30: #{two_mlp_head.1} parent=27 // pred_check_branch
        %196 = sbr.rel (%p194) target = $region32
      $region31: #{two_mlp_head.1} parent=27 // pred_region
        %s197 = smul.u32 4, %s19
        %p198 = scmp.lt.s32.totalorder %s18, 0
        %s199 = scalar_select %p198, %s18, 0
        %p200 = scmp.lt.s32.totalorder %s197, 7
        %s201 = scalar_select %p200, %s197, 7
        %s202 = smul.addr %s199, 8
        %s203 = sadd.s32 %s201, %s202
        %s204 = smul.addr %s203, 8
        %s205 = scalar_lea.vmem %s0, %s204
        %s206 = smul.u32 4, %s19
      $region32: #{two_mlp_head.1} parent=27 // pred_fallthru
        _
      // Predicated region
      $region33: #{two_mlp_head.1} parent=27 // pred_check
        %p207 = pneg %p71
      $region34: #{two_mlp_head.1} parent=27 // pred_check_branch
        %209 = sbr.rel (%p207) target = $region36
      $region35: #{two_mlp_head.1} parent=27 // pred_region
        %s210 = smul.u32 64, %s19
        %p211 = scmp.lt.s32.totalorder %s210, 127
        %s212 = scalar_select %p211, %s210, 127
        %s213 = smul.addr %s212, 8
        %s214 = scalar_lea.vmem %s1, %s213
        %s215 = smul.u32 64, %s19
      $region36: #{two_mlp_head.1} parent=27 // pred_fallthru
        _
    $region28: #{two_mlp_head.1} parent=5 // pred_fallthru
      _
    %p216 = scmp.le.s32.totalorder 1, %s11
    %p217 = scmp.lt.s32.totalorder %s11, 3
    %p218 = pnand %p216, %p217
    %p219 = pneg %p218
    // Predicated region
    $region37: #{two_mlp_head.1} parent=5 // pred_check
      _
    $region38: #{two_mlp_head.1} parent=5 // pred_check_branch
      %221 = sbr.rel (%p218) target = $region40
    $region39: #{two_mlp_head.1} parent=5 // pred_region
      %s222 = ssub.s32 %s11, 1
      %s223 = smul.u32 4, %s21
      %p224 = scmp.lt.s32.totalorder %s20, 0
      %s225 = scalar_select %p224, %s20, 0
      %p226 = scmp.lt.s32.totalorder %s223, 7
      %s227 = scalar_select %p226, %s223, 7
      %s228 = smul.addr %s225, 8
      %s229 = sadd.s32 %s227, %s228
      %s230 = smul.addr %s229, 8
      %s231 = scalar_lea.vmem %s0, %s230
      %p232 = pneg %p51
      %p233 = pneg %p48
      %s234 = smul.u32 64, %s21
      %p235 = scmp.lt.s32.totalorder %s234, 127
      %s236 = scalar_select %p235, %s234, 127
      %s237 = smul.addr %s236, 8
      %s238 = scalar_lea.vmem %s1, %s237
      %p239 = pneg %p77
      %p240 = pneg %p74
      %p241 = pneg %p98
      %p242 = pneg %p95
      %p243 = pneg %p119
      %p244 = pneg %p116
      %p245 = pneg %p140
      %p246 = pneg %p137
      %p247 = pneg %p166
      %p248 = pneg %p163
      %p249 = scmp.lt.s32.totalorder %s20, 0
      %s250 = scalar_select %p249, %s20, 0
      %s251 = smul.addr %s250, 8
      %s252 = scalar_lea.vmem %s5, %s251
      %s253 = smul.u32 4, %s21
      %p254 = scmp.lt.s32.totalorder %s20, 0
      %s255 = scalar_select %p254, %s20, 0
      %p256 = scmp.lt.s32.totalorder %s253, 7
      %s257 = scalar_select %p256, %s253, 7
      %s258 = smul.addr %s255, 8
      %s259 = sadd.s32 %s257, %s258
      %s260 = smul.addr %s259, 8
      %s261 = scalar_lea.vmem %s0, %s260
      %s262 = smul.u32 4, %s21
      %s263 = smul.u32 64, %s21
      %p264 = scmp.lt.s32.totalorder %s263, 127
      %s265 = scalar_select %p264, %s263, 127
      %s266 = smul.addr %s265, 8
      %s267 = scalar_lea.vmem %s1, %s266
      %s268 = smul.u32 64, %s21
      %p269 = scmp.lt.s32.totalorder %s20, 0
      %s270 = scalar_select %p269, %s20, 0
      %s271 = smul.addr %s270, 8
      %s272 = scalar_lea.vmem %s5, %s271
      %p273 = scmp.eq.s32.totalorder %s21, 0
      // Predicated region
      $region41: #{two_mlp_head.1} parent=39 // pred_check
        %p274 = pneg %p273
      $region42: #{two_mlp_head.1} parent=39 // pred_check_branch
        %276 = sbr.rel (%p274) target = $region44
      $region43: #{two_mlp_head.1} parent=39 // pred_region
        %277 = vst [vmem:[#allocation2] sm:$0xff] 0.0
      $region44: #{two_mlp_head.1} parent=39 // pred_fallthru
        _
      %v278 = vld [vmem:[#allocation2] sm:$0xff]
      %v279 = vld [vmem:[%s261] sm:$0xff]
      %v280 = vld [vmem:[%s261 + $0x8] sm:$0xff]
      %v281 = vld [vmem:[%s261 + $0x10] sm:$0xff]
      %v282 = vld [vmem:[%s261 + $0x18] sm:$0xff]
      %v283 = vld [vmem:[%s267] sm:$0xff]
      %v284 = vld [vmem:[%s267 + $0x8] sm:$0xff]
      %v285 = vld [vmem:[%s267 + $0x10] sm:$0xff]
      %v286 = vld [vmem:[%s267 + $0x18] sm:$0xff]
      %v287 = vld [vmem:[%s267 + $0x20] sm:$0xff]
      %v288 = vld [vmem:[%s267 + $0x28] sm:$0xff]
      %v289 = vld [vmem:[%s267 + $0x30] sm:$0xff]
      %v290 = vld [vmem:[%s267 + $0x38] sm:$0xff]
      %v291 = vld [vmem:[%s267 + $0x40] sm:$0xff]
      %v292 = vld [vmem:[%s267 + $0x48] sm:$0xff]
      %v293 = vld [vmem:[%s267 + $0x50] sm:$0xff]
      %v294 = vld [vmem:[%s267 + $0x58] sm:$0xff]
      %v295 = vld [vmem:[%s267 + $0x60] sm:$0xff]
      %v296 = vld [vmem:[%s267 + $0x68] sm:$0xff]
      %v297 = vld [vmem:[%s267 + $0x70] sm:$0xff]
      %v298 = vld [vmem:[%s267 + $0x78] sm:$0xff]
      %v299 = vld [vmem:[%s267 + $0x80] sm:$0xff]
      %v300 = vld [vmem:[%s267 + $0x88] sm:$0xff]
      %v301 = vld [vmem:[%s267 + $0x90] sm:$0xff]
      %v302 = vld [vmem:[%s267 + $0x98] sm:$0xff]
      %v303 = vld [vmem:[%s267 + $0xa0] sm:$0xff]
      %v304 = vld [vmem:[%s267 + $0xa8] sm:$0xff]
      %v305 = vld [vmem:[%s267 + $0xb0] sm:$0xff]
      %v306 = vld [vmem:[%s267 + $0xb8] sm:$0xff]
      %v307 = vld [vmem:[%s267 + $0xc0] sm:$0xff]
      %v308 = vld [vmem:[%s267 + $0xc8] sm:$0xff]
      %v309 = vld [vmem:[%s267 + $0xd0] sm:$0xff]
      %v310 = vld [vmem:[%s267 + $0xd8] sm:$0xff]
      %v311 = vld [vmem:[%s267 + $0xe0] sm:$0xff]
      %v312 = vld [vmem:[%s267 + $0xe8] sm:$0xff]
      %v313 = vld [vmem:[%s267 + $0xf0] sm:$0xff]
      %v314 = vld [vmem:[%s267 + $0xf8] sm:$0xff]
      %v315 = vld [vmem:[%s267 + $0x100] sm:$0xff]
      %v316 = vld [vmem:[%s267 + $0x108] sm:$0xff]
      %v317 = vld [vmem:[%s267 + $0x110] sm:$0xff]
      %v318 = vld [vmem:[%s267 + $0x118] sm:$0xff]
      %v319 = vld [vmem:[%s267 + $0x120] sm:$0xff]
      %v320 = vld [vmem:[%s267 + $0x128] sm:$0xff]
      %v321 = vld [vmem:[%s267 + $0x130] sm:$0xff]
      %v322 = vld [vmem:[%s267 + $0x138] sm:$0xff]
      %v323 = vld [vmem:[%s267 + $0x140] sm:$0xff]
      %v324 = vld [vmem:[%s267 + $0x148] sm:$0xff]
      %v325 = vld [vmem:[%s267 + $0x150] sm:$0xff]
      %v326 = vld [vmem:[%s267 + $0x158] sm:$0xff]
      %v327 = vld [vmem:[%s267 + $0x160] sm:$0xff]
      %v328 = vld [vmem:[%s267 + $0x168] sm:$0xff]
      %v329 = vld [vmem:[%s267 + $0x170] sm:$0xff]
      %v330 = vld [vmem:[%s267 + $0x178] sm:$0xff]
      %v331 = vld [vmem:[%s267 + $0x180] sm:$0xff]
      %v332 = vld [vmem:[%s267 + $0x188] sm:$0xff]
      %v333 = vld [vmem:[%s267 + $0x190] sm:$0xff]
      %v334 = vld [vmem:[%s267 + $0x198] sm:$0xff]
      %v335 = vld [vmem:[%s267 + $0x1a0] sm:$0xff]
      %v336 = vld [vmem:[%s267 + $0x1a8] sm:$0xff]
      %v337 = vld [vmem:[%s267 + $0x1b0] sm:$0xff]
      %v338 = vld [vmem:[%s267 + $0x1b8] sm:$0xff]
      %v339 = vld [vmem:[%s267 + $0x1c0] sm:$0xff]
      %v340 = vld [vmem:[%s267 + $0x1c8] sm:$0xff]
      %v341 = vld [vmem:[%s267 + $0x1d0] sm:$0xff]
      %v342 = vld [vmem:[%s267 + $0x1d8] sm:$0xff]
      %v343 = vld [vmem:[%s267 + $0x1e0] sm:$0xff]
      %v344 = vld [vmem:[%s267 + $0x1e8] sm:$0xff]
      %v345 = vld [vmem:[%s267 + $0x1f0] sm:$0xff]
      %v346 = vld [vmem:[%s267 + $0x1f8] sm:$0xff]
      %347 = vmatpush.msra.mxu0 %v298
      %348 = vmatpush.msra.mxu0 %v297
      %349 = vmatpush.msra.mxu0 %v296
      %350 = vmatpush.msra.mxu0 %v295
      %351 = vmatpush.msra.mxu0 %v294
      %352 = vmatpush.msra.mxu0 %v293
      %353 = vmatpush.msra.mxu0 %v292
      %354 = vmatpush.msra.mxu0 %v291
      %355 = vmatpush.msra.mxu0 %v290
      %356 = vmatpush.msra.mxu0 %v289
      %357 = vmatpush.msra.mxu0 %v288
      %358 = vmatpush.msra.mxu0 %v287
      %359 = vmatpush.msra.mxu0 %v286
      %360 = vmatpush.msra.mxu0 %v285
      %361 = vmatpush.msra.mxu0 %v284
      %362 = vmatpush.msra.mxu0 %v283
      %363 = vmatmul.f32.gmra.mxu0 %v279
      %v364 = vpop.f32.mrf.mxu0
      %v365 = vadd.f32 0.0, %v364
      %366 = vdwg.mxu0
      %367 = vmatpush.msra.mxu0 %v314
      %368 = vmatpush.msra.mxu0 %v313
      %369 = vmatpush.msra.mxu0 %v312
      %370 = vmatpush.msra.mxu0 %v311
      %371 = vmatpush.msra.mxu0 %v310
      %372 = vmatpush.msra.mxu0 %v309
      %373 = vmatpush.msra.mxu0 %v308
      %374 = vmatpush.msra.mxu0 %v307
      %375 = vmatpush.msra.mxu0 %v306
      %376 = vmatpush.msra.mxu0 %v305
      %377 = vmatpush.msra.mxu0 %v304
      %378 = vmatpush.msra.mxu0 %v303
      %379 = vmatpush.msra.mxu0 %v302
      %380 = vmatpush.msra.mxu0 %v301
      %381 = vmatpush.msra.mxu0 %v300
      %382 = vmatpush.msra.mxu0 %v299
      %383 = vmatmul.f32.gmra.mxu0 %v280
      %v384 = vpop.f32.mrf.mxu0
      %v385 = vadd.f32 %v365, %v384
      %386 = vdwg.mxu0
      %387 = vmatpush.msra.mxu0 %v330
      %388 = vmatpush.msra.mxu0 %v329
      %389 = vmatpush.msra.mxu0 %v328
      %390 = vmatpush.msra.mxu0 %v327
      %391 = vmatpush.msra.mxu0 %v326
      %392 = vmatpush.msra.mxu0 %v325
      %393 = vmatpush.msra.mxu0 %v324
      %394 = vmatpush.msra.mxu0 %v323
      %395 = vmatpush.msra.mxu0 %v322
      %396 = vmatpush.msra.mxu0 %v321
      %397 = vmatpush.msra.mxu0 %v320
      %398 = vmatpush.msra.mxu0 %v319
      %399 = vmatpush.msra.mxu0 %v318
      %400 = vmatpush.msra.mxu0 %v317
      %401 = vmatpush.msra.mxu0 %v316
      %402 = vmatpush.msra.mxu0 %v315
      %403 = vmatmul.f32.gmra.mxu0 %v281
      %v404 = vpop.f32.mrf.mxu0
      %v405 = vadd.f32 %v385, %v404
      %406 = vdwg.mxu0
      %407 = vmatpush.msra.mxu0 %v346
      %408 = vmatpush.msra.mxu0 %v345
      %409 = vmatpush.msra.mxu0 %v344
      %410 = vmatpush.msra.mxu0 %v343
      %411 = vmatpush.msra.mxu0 %v342
      %412 = vmatpush.msra.mxu0 %v341
      %413 = vmatpush.msra.mxu0 %v340
      %414 = vmatpush.msra.mxu0 %v339
      %415 = vmatpush.msra.mxu0 %v338
      %416 = vmatpush.msra.mxu0 %v337
      %417 = vmatpush.msra.mxu0 %v336
      %418 = vmatpush.msra.mxu0 %v335
      %419 = vmatpush.msra.mxu0 %v334
      %420 = vmatpush.msra.mxu0 %v333
      %421 = vmatpush.msra.mxu0 %v332
      %422 = vmatpush.msra.mxu0 %v331
      %423 = vmatmul.f32.gmra.mxu0 %v282
      %v424 = vpop.f32.mrf.mxu0
      %v425 = vadd.f32 %v405, %v424
      %426 = vdwg.mxu0
      %v427 = vadd.f32 %v278, %v425
      %428 = vst [vmem:[#allocation2] sm:$0xff] %v427
      %p429 = scmp.eq.s32.totalorder %s21, 1
      // Predicated region
      $region45: #{two_mlp_head.1} parent=39 // pred_check
        %p430 = pneg %p429
      $region46: #{two_mlp_head.1} parent=39 // pred_check_branch
        %432 = sbr.rel (%p430) target = $region48
      $region47: #{two_mlp_head.1} parent=39 // pred_region
        %v433 = vld [vmem:[#allocation2] sm:$0xff]
        %v434 = vld [vmem:[%s2] sm:$0x1]
        %v436 = vperm.slane %v434, 0
        %v438 = vadd.f32 %v433, %v436
        %v439 = vmax.f32 %v438, 0.0
        %v440 = vld [vmem:[%s3] sm:$0xff]
        %v441 = vld [vmem:[%s3 + $0x8] sm:$0xff]
        %v442 = vld [vmem:[%s3 + $0x10] sm:$0xff]
        %v443 = vld [vmem:[%s3 + $0x18] sm:$0xff]
        %v444 = vld [vmem:[%s3 + $0x20] sm:$0xff]
        %v445 = vld [vmem:[%s3 + $0x28] sm:$0xff]
        %v446 = vld [vmem:[%s3 + $0x30] sm:$0xff]
        %v447 = vld [vmem:[%s3 + $0x38] sm:$0xff]
        %v448 = vld [vmem:[%s3 + $0x40] sm:$0xff]
        %v449 = vld [vmem:[%s3 + $0x48] sm:$0xff]
        %v450 = vld [vmem:[%s3 + $0x50] sm:$0xff]
        %v451 = vld [vmem:[%s3 + $0x58] sm:$0xff]
        %v452 = vld [vmem:[%s3 + $0x60] sm:$0xff]
        %v453 = vld [vmem:[%s3 + $0x68] sm:$0xff]
        %v454 = vld [vmem:[%s3 + $0x70] sm:$0xff]
        %v455 = vld [vmem:[%s3 + $0x78] sm:$0xff]
        %v456 = vld [vmem:[%s4] sm:$0x1]
        %v458 = vperm.slane %v456, 0
        %460 = vmatpush.msra.mxu0 %v455
        %461 = vmatpush.msra.mxu0 %v454
        %462 = vmatpush.msra.mxu0 %v453
        %463 = vmatpush.msra.mxu0 %v452
        %464 = vmatpush.msra.mxu0 %v451
        %465 = vmatpush.msra.mxu0 %v450
        %466 = vmatpush.msra.mxu0 %v449
        %467 = vmatpush.msra.mxu0 %v448
        %468 = vmatpush.msra.mxu0 %v447
        %469 = vmatpush.msra.mxu0 %v446
        %470 = vmatpush.msra.mxu0 %v445
        %471 = vmatpush.msra.mxu0 %v444
        %472 = vmatpush.msra.mxu0 %v443
        %473 = vmatpush.msra.mxu0 %v442
        %474 = vmatpush.msra.mxu0 %v441
        %475 = vmatpush.msra.mxu0 %v440
        %476 = vmatmul.f32.gmra.mxu0 %v439
        %v477 = vpop.f32.mrf.mxu0
        %v478 = vadd.f32 %v458, %v477
        %479 = vdwg.mxu0
        %v480 = vmax.f32 %v478, 0.0
        %481 = vst [vmem:[%s272] sm:$0xff] %v480
      $region48: #{two_mlp_head.1} parent=39 // pred_fallthru
        _
      %p482 = scmp.lt.s32.totalorder %s20, 0
      %s483 = scalar_select %p482, %s20, 0
      %s484 = smul.addr %s483, 8
      %s485 = scalar_lea.vmem %s5, %s484
      // Predicated region
      $region49: #{two_mlp_head.1} parent=39 // pred_check
        %p486 = pneg %p163
      $region50: #{two_mlp_head.1} parent=39 // pred_check_branch
        %488 = sbr.rel (%p486) target = $region52
      $region51: #{two_mlp_head.1} parent=39 // pred_region
        _
      $region52: #{two_mlp_head.1} parent=39 // pred_fallthru
        _
      // Predicated region
      $region53: #{two_mlp_head.1} parent=39 // pred_check
        %p489 = pneg %p163
      $region54: #{two_mlp_head.1} parent=39 // pred_check_branch
        %491 = sbr.rel (%p489) target = $region56
      $region55: #{two_mlp_head.1} parent=39 // pred_region
        %p492 = scmp.lt.s32.totalorder %s20, 0
        %s493 = scalar_select %p492, %s20, 0
        %s494 = smul.addr %s493, 8
        %s495 = scalar_lea.vmem %s5, %s494
      $region56: #{two_mlp_head.1} parent=39 // pred_fallthru
        _
    $region40: #{two_mlp_head.1} parent=5 // pred_fallthru
      _
    %p496 = scmp.le.s32.totalorder 2, %s11
    // Predicated region
    $region57: #{two_mlp_head.1} parent=5 // pred_check
      %p497 = pneg %p496
    $region58: #{two_mlp_head.1} parent=5 // pred_check_branch
      %499 = sbr.rel (%p497) target = $region60
    $region59: #{two_mlp_head.1} parent=5 // pred_region
      %s500 = ssub.s32 %s11, 2
    $region60: #{two_mlp_head.1} parent=5 // pred_fallthru
      _
  $region6: #{two_mlp_head.1} parent=0 // loop_footer
    %s15 = sadd.s32 1, %s11
  $region7: #{two_mlp_head.1} parent=0 // loop_footer_branch
    %10 = sbr.rel target = $region3
  $region8: #{two_mlp_head.1} parent=0 // loop_exit
    _

</llo_original>
